<compile_context>
chip_gen: v6e
topology: v6e:2x2x1
jax: 0.10.0
libtpu: 0.0.40
codegen_flags: <defaults>
</compile_context>

<pallas_src>
import functools

import jax
import jax.numpy as jnp
import numpy as np
from jax import lax
from jax.experimental import pallas as pl
from jax.experimental.pallas import tpu as pltpu


def _down_reshape_kernel(x_ref, o_ref, *, sf, rows, row_start, top, bottom,
                         Wp, W1, w_crop, w_off, w_left):
    """x_ref: (blk_h_in, W2) input slab for one channel; o_ref: (out_blk_h, W1)."""
    W2 = x_ref.shape[1]

    def pool_rows(start, count):
        # Max over the sf H-phases; reads rows start, start+sf, ... (sublane-strided).
        acc = None
        for dh in range(sf):
            if count > 1 and sf > 1:
                piece = x_ref[pl.ds(start + dh, count, stride=sf), :]
            else:
                piece = x_ref[pl.ds(start + dh, count), :]
            acc = piece if acc is None else jnp.maximum(acc, piece)
        return acc  # (count, W2), input dtype

    # Source (pooled) column for each output column, with the W crop offset or the
    # replicate-pad clamp folded in.  Built once per kernel invocation from iotas
    # (no large embedded constants).
    j = lax.broadcasted_iota(jnp.int32, (W2, W1), 1)   # output column index
    w = lax.broadcasted_iota(jnp.int32, (W2, W1), 0)   # input (lane) column index
    if w_crop:
        src_col = (j + w_off) * sf
    else:
        src_col = jnp.clip(j - w_left, 0, Wp - 1) * sf

    def w_transform(hp):
        # (r, W2) -> (r, W1): W max-pool + lane compaction + crop/replicate-pad via
        # exact 0/1 selection matmuls (each output column has exactly one 1.0 source).
        prec = lax.Precision.HIGHEST if hp.dtype == jnp.dtype(jnp.float32) else None
        out = None
        for dw in range(sf):
            sel = (w == src_col + dw).astype(hp.dtype)
            part = lax.dot_general(
                hp, sel, (((1,), (0,)), ((), ())),
                preferred_element_type=jnp.float32,
                precision=prec)
            out = part if out is None else jnp.maximum(out, part)
        return out.astype(o_ref.dtype)

    core = w_transform(pool_rows(row_start, rows))      # (rows, W1)

    if top == 0 and bottom == 0:
        o_ref[...] = core
    else:
        # Interior plus replicate-padded edge rows, written with direct slice stores.
        o_ref[pl.ds(top, rows), :] = core
        if top > 0:
            erow = w_transform(pool_rows(row_start, 1))                    # pooled row 0
            for r in range(top):
                o_ref[pl.ds(r, 1), :] = erow
        if bottom > 0:
            erow = w_transform(pool_rows(row_start + (rows - 1) * sf, 1))  # last pooled row
            for r in range(bottom):
                o_ref[pl.ds(top + rows + r, 1), :] = erow


def down_reshape(x1, x2, scale_factor=2):
    """Pallas TPU equivalent of DownReshape.forward(x1, x2). NCHW in / NCHW out."""
    sf = int(scale_factor)
    N, C, H2, W2 = x2.shape
    _, _, H1, W1 = x1.shape
    Hp, Wp = H2 // sf, W2 // sf
    dtype = x2.dtype
    itemsize = jnp.dtype(dtype).itemsize

    # ---- W mapping (center-crop or replicate-pad), folded into the kernel selection. ----
    if Wp >= W1:
        w_crop, w_off, w_left = True, (Wp - W1) // 2, 0
    else:
        w_crop, w_off, w_left = False, 0, (W1 - Wp) // 2

    # ---- H mapping + H tiling. ----
    if Hp >= H1:
        top = bottom = 0
        h_off = (Hp - H1) // 2
        # Largest H1-divisor tile (in pooled rows) whose input slab is ~<= 1 MiB, keeps
        # the crop offset block-aligned, and keeps second-minor block dims legal.
        cap = max(1, (1 << 20) // max(1, sf * W2 * itemsize))
        th = None
        for d in range(min(H1, cap), 0, -1):
            if H1 % d or h_off % d:
                continue
            if d % 8 and d != H1:
                continue
            if (d * sf) % 8 and d * sf != H2:
                continue
            th = d
            break
        if th is not None:
            rows, row_start = th, 0
            n_ht = H1 // th
            blk_h_in, out_blk_h = th * sf, th
            in_blk_off = h_off // th
        else:
            # Fallback: one full frame per channel, crop offset applied in-kernel.
            rows, row_start = H1, h_off * sf
            n_ht, blk_h_in, out_blk_h, in_blk_off = 1, H2, H1, 0
    else:
        # Replicate-pad in H: single H tile per channel, pad rows written in-kernel.
        top = (H1 - Hp) // 2
        bottom = (H1 - Hp) - top
        rows, row_start = Hp, 0
        n_ht, blk_h_in, out_blk_h, in_blk_off = 1, H2, H1, 0

    NC = N * C
    x2_f = x2.reshape(NC, H2, W2)   # free reshape (leading dims only), no transpose

    kernel = functools.partial(
        _down_reshape_kernel, sf=sf, rows=rows, row_start=row_start,
        top=top, bottom=bottom, Wp=Wp, W1=W1,
        w_crop=w_crop, w_off=w_off, w_left=w_left)

    in_bytes = blk_h_in * W2 * itemsize
    out_bytes = out_blk_h * W1 * itemsize
    vmem_limit = int(min(max(8 * (in_bytes + out_bytes) + (4 << 20), 16 << 20), 32 << 20))

    out_f = pl.pallas_call(
        kernel,
        out_shape=jax.ShapeDtypeStruct((NC, H1, W1), dtype),
        grid=(NC, n_ht),
        in_specs=[pl.BlockSpec((None, blk_h_in, W2),
                               lambda nc, h: (nc, h + in_blk_off, 0))],
        out_specs=pl.BlockSpec((None, out_blk_h, W1),
                               lambda nc, h: (nc, h, 0)),
        compiler_params=pltpu.CompilerParams(
            dimension_semantics=("parallel", "parallel"),
            vmem_limit_bytes=vmem_limit),
    )(x2_f)

    return out_f.reshape(N, C, H1, W1)   # free reshape, no transpose


def _reference(x1, x2, sf=2):
    """Pure-JAX reference mirroring the PyTorch DownReshape semantics."""
    N, C, H2, W2 = x2.shape
    _, _, H1, W1 = x1.shape
    Hp, Wp = H2 // sf, W2 // sf
    xc = x2[:, :, : Hp * sf, : Wp * sf]
    pooled = xc.reshape(N, C, Hp, sf, Wp, sf).max(axis=(3, 5))
    if Hp > H1:
        off = (Hp - H1) // 2
        pooled = pooled[:, :, off:off + H1, :]
    elif Hp < H1:
        top = (H1 - Hp) // 2
        pooled = jnp.pad(pooled, ((0, 0), (0, 0), (top, H1 - Hp - top), (0, 0)), mode="edge")
    if Wp > W1:
        off = (Wp - W1) // 2
        pooled = pooled[:, :, :, off:off + W1]
    elif Wp < W1:
        left = (W1 - Wp) // 2
        pooled = jnp.pad(pooled, ((0, 0), (0, 0), (0, 0), (left, W1 - Wp - left)), mode="edge")
    return pooled


if __name__ == "__main__":
    key = jax.random.PRNGKey(0)
    k1, k2, k3 = jax.random.split(key, 3)

    # Case 1: pooled x2 exactly matches x1's spatial dims (tiled path, no crop / pad).
    x1_a = jax.random.normal(k1, (2, 4, 16, 16), dtype=jnp.float32)
    x2_a = jax.random.normal(k2, (2, 4, 32, 32), dtype=jnp.float32)
    out_a = jax.block_until_ready(down_reshape(x1_a, x2_a))
    np.testing.assert_allclose(np.asarray(out_a), np.asarray(_reference(x1_a, x2_a)),
                               rtol=1e-6, atol=1e-6)

    # Case 2: pooled x2 (16x16) -> replicate-pad in H (->18) and center-crop in W (->12).
    x1_b = jax.random.normal(k3, (2, 4, 18, 12), dtype=jnp.float32)
    out_b = jax.block_until_ready(down_reshape(x1_b, x2_a))
    np.testing.assert_allclose(np.asarray(out_b), np.asarray(_reference(x1_b, x2_a)),
                               rtol=1e-6, atol=1e-6)

    # Case 3: bf16 inputs stay bf16 through the kernel (halved HBM traffic, e.g. on v5e).
    x2_c = x2_a.astype(jnp.bfloat16)
    out_c = jax.block_until_ready(down_reshape(x1_a, x2_c))
    np.testing.assert_allclose(np.asarray(out_c.astype(jnp.float32)),
                               np.asarray(_reference(x1_a, x2_c).astype(jnp.float32)),
                               rtol=1e-2, atol=1e-2)

    print("KERNEL_OK")
</pallas_src>

<mosaic_0001>
module attributes {stable_mosaic.version = 11 : i64} {
  func.func @_down_reshape_kernel(%arg0: i32, %arg1: i32, %arg2: memref<1x32x32xf32, #tpu.memory_space<vmem>>, %arg3: memref<1x16x16xf32, #tpu.memory_space<vmem>>) attributes {dimension_semantics = [#tpu.dimension_semantics<parallel>, #tpu.dimension_semantics<parallel>], iteration_bounds = array<i64: 8, 1>, scalar_prefetch = 0 : i64, scratch_operands = 0 : i64, tpu.core_type = #tpu.core_type<tc>, window_params = [{transform_indices = @transform_0, window_bounds = array<i64: 1, 32, 32>}, {transform_indices = @transform_1, window_bounds = array<i64: 1, 16, 16>}]} {
    %0 = tpu.iota {dimensions = array<i32: 1>} : vector<32x16xi32>
    %1 = tpu.iota {dimensions = array<i32: 0>} : vector<32x16xi32>
    %c0_i32 = arith.constant 0 : i32
    %2 = vector.broadcast %c0_i32 : i32 to vector<32x16xi32>
    %3 = arith.addi %0, %2 : vector<32x16xi32>
    %c2_i32 = arith.constant 2 : i32
    %4 = vector.broadcast %c2_i32 : i32 to vector<32x16xi32>
    %5 = arith.muli %3, %4 : vector<32x16xi32>
    %c0 = arith.constant 0 : index
    %c0_0 = arith.constant 0 : index
    %c0_1 = arith.constant 0 : index
    %6 = tpu.strided_load %arg2[%c0, %c0_0, %c0_1] {strides = array<i32: 1, 2, 1>} : memref<1x32x32xf32, #tpu.memory_space<vmem>>, vector<1x16x32xf32>
    %7 = vector.shape_cast %6 : vector<1x16x32xf32> to vector<16x32xf32>
    %c0_2 = arith.constant 0 : index
    %c1 = arith.constant 1 : index
    %c0_3 = arith.constant 0 : index
    %8 = tpu.strided_load %arg2[%c0_2, %c1, %c0_3] {strides = array<i32: 1, 2, 1>} : memref<1x32x32xf32, #tpu.memory_space<vmem>>, vector<1x16x32xf32>
    %9 = vector.shape_cast %8 : vector<1x16x32xf32> to vector<16x32xf32>
    %10 = arith.maximumf %7, %9 : vector<16x32xf32>
    %c0_i32_4 = arith.constant 0 : i32
    %11 = vector.broadcast %c0_i32_4 : i32 to vector<32x16xi32>
    %12 = arith.addi %5, %11 : vector<32x16xi32>
    %13 = arith.cmpi eq, %1, %12 : vector<32x16xi32>
    %14 = arith.extui %13 : vector<32x16xi1> to vector<32x16xi32>
    %15 = arith.sitofp %14 : vector<32x16xi32> to vector<32x16xf32>
    %cst = arith.constant dense<0.000000e+00> : vector<16x16xf32>
    %16 = tpu.matmul %10, %15, %cst {dimension_numbers = #tpu.dot_dimension_numbers<[1], [0], [0], [1], [0, 0, 1, 1], [], []>, precision = #tpu.contract_precision<fp32>} : vector<16x32xf32>, vector<32x16xf32>, vector<16x16xf32> -> vector<16x16xf32>
    %c1_i32 = arith.constant 1 : i32
    %17 = vector.broadcast %c1_i32 : i32 to vector<32x16xi32>
    %18 = arith.addi %5, %17 : vector<32x16xi32>
    %19 = arith.cmpi eq, %1, %18 : vector<32x16xi32>
    %20 = arith.extui %19 : vector<32x16xi1> to vector<32x16xi32>
    %21 = arith.sitofp %20 : vector<32x16xi32> to vector<32x16xf32>
    %cst_5 = arith.constant dense<0.000000e+00> : vector<16x16xf32>
    %22 = tpu.matmul %10, %21, %cst_5 {dimension_numbers = #tpu.dot_dimension_numbers<[1], [0], [0], [1], [0, 0, 1, 1], [], []>, precision = #tpu.contract_precision<fp32>} : vector<16x32xf32>, vector<32x16xf32>, vector<16x16xf32> -> vector<16x16xf32>
    %23 = arith.maximumf %16, %22 : vector<16x16xf32>
    %c0_6 = arith.constant 0 : index
    %c0_7 = arith.constant 0 : index
    %c0_8 = arith.constant 0 : index
    %24 = vector.load %arg3[%c0_6, %c0_7, %c0_8] : memref<1x16x16xf32, #tpu.memory_space<vmem>>, vector<1x16x16xf32>
    %25 = vector.shape_cast %24 : vector<1x16x16xf32> to vector<16x16xf32>
    %26 = vector.shape_cast %23 : vector<16x16xf32> to vector<1x16x16xf32>
    tpu.vector_store %arg3[%c0_6, %c0_7, %c0_8], %26 {strides = array<i32>} : memref<1x16x16xf32, #tpu.memory_space<vmem>>, vector<1x16x16xf32>,
    return
  }
  func.func @transform_0(%arg0: i32, %arg1: i32) -> (i32, i32, i32) {
    %c0_i32 = arith.constant 0 : i32
    %0 = arith.addi %arg1, %c0_i32 : i32
    %c0_i32_0 = arith.constant 0 : i32
    %c0_i32_1 = arith.constant 0 : i32
    return %arg0, %0, %c0_i32_0 : i32, i32, i32
  }
  func.func @transform_1(%arg0: i32, %arg1: i32) -> (i32, i32, i32) {
    %c0_i32 = arith.constant 0 : i32
    %c0_i32_0 = arith.constant 0 : i32
    return %arg0, %arg1, %c0_i32 : i32, i32, i32
  }
}

</mosaic_0001>

<llo_original>
// kernel: tpu_custom_call.1
$region0: #{tpu_custom_call.1}
  #allocation0 [shape = 'u32[]', space=smem, size = 0x4, offset = 0x4, fixed_abs, tag = 'smem constant byte address 0x4 - core index']
  #allocation1 [shape = 'u32[144,128]{1,0:T(1,128)}', space=vmem, size = 0x12000, scoped, tag = 'internal scratch']
  %s0 = inlined_call_operand.hbm [shape: f32[8,32,32], index: 0, kind: input, shape index: {}]
  %s1 = inlined_call_operand.hbm [shape: f32[8,16,16], index: 1, kind: output, shape index: {}]
  %s2 = sld [smem:[#allocation0]]
  $region41: #{tpu_custom_call.1} parent=0
    _
  %s4 = ssub.s32 1, %s2
  %s5 = scalar_select 0, %s4, %s2
  $region1: #{tpu_custom_call.1} parent=0
    #allocation2 [shape = 'u8[32768]{0}', space=vmem, size = 0x8000, scoped, tag = 'input window, operand 0']
    #allocation3 [shape = 's32[2]{0}', space=sflag, size = 0x8, scoped, tag = 'scoped memory for tpu_custom_call.1']
    #allocation4 [shape = 's32[2]{0}', space=sflag, size = 0x8, scoped, tag = 'scoped memory for tpu_custom_call.1']
    #allocation5 [shape = 'u8[16384]{0}', space=vmem, size = 0x4000, scoped, tag = 'output window, operand 0']
    %6 = vsyncpa [#allocation3], 0
    %s7 = scalar_lea.sflag [#allocation3], 1
    %8 = vsyncpa %s7, 0
    %9 = vsyncpa [#allocation4], 0
    %s10 = scalar_lea.sflag [#allocation4], 1
    %11 = vsyncpa %s10, 0
    loop: start=0, step=1, limit=10
    $region2: #{tpu_custom_call.1} parent=1 // loop_pre_header
      _
    $region3: #{tpu_custom_call.1} parent=1 // loop_header
      %s13 = sphi 0, %s17
      %p14 = scmp.ge.s32.totalorder %s13, 10
      %s20 = sphi 0, %s32
      %s21 = sphi 0, %s28
      %s22 = sphi 0, %s20
      %s23 = sphi 0, %s21
      %s24 = sphi 0, %s22
      %s25 = sphi 0, %s23
      %s37 = sphi 0, %s39
      %s40 = sphi 0, %s37
      %s41 = sphi 0, %s40
      %s57 = sphi 0, %s41
      %s65 = sphi 0, %s67
      %s68 = sphi 0, %s65
      %s69 = sphi 0, %s68
      %s85 = sphi 0, %s69
    $region4: #{tpu_custom_call.1} parent=1 // loop_header_branch
      %16 = sbr.rel (%p14) target = $region8
    $region5: #{tpu_custom_call.1} parent=1 // loop_body
      %s18 = ssub.s32 %s13, 1
      %s19 = ssub.s32 %s13, 2
      %s26 = sadd.s32 1, %s21
      %p27 = scmp.ge.s32.totalorder %s26, 1
      %s28 = scalar_select %p27, 0, %s26
      %s29 = sadd.s32 1, %s20
      %s30 = scalar_select %p27, %s29, %s20
      %p31 = scmp.ge.s32.totalorder %s30, 8
      %s32 = scalar_select %p31, 0, %s30
      %s33 = ssub.s32 %s20, %s32
      %s34 = ssub.s32 %s21, %s28
      %s35 = sor.u32 %s33, %s34
      %p36 = scmp.eq.s32.totalorder %s35, 0
      %s38 = sadd.s32 %s37, 1
      %s39 = scalar_select %p36, %s37, %s38
      %p42 = pneg %p36
      %p43 = scmp.eq.s32.totalorder %s13, 7
      %p44 = por %p42, %p43
      %p45 = scmp.ne.s32.totalorder %s37, %s40
      %p46 = scmp.eq.s32.totalorder %s13, 0
      %p47 = por %p45, %p46
      %p48 = scmp.ne.s32.totalorder %s37, %s40
      %p49 = scmp.eq.s32.totalorder %s18, 7
      %p50 = por %p48, %p49
      %p51 = scmp.ne.s32.totalorder %s40, %s41
      %p52 = scmp.eq.s32.totalorder %s18, 0
      %p53 = por %p51, %p52
      %p54 = scmp.ne.s32.totalorder %s40, %s41
      %p55 = scmp.eq.s32.totalorder %s19, 7
      %p56 = por %p54, %p55
      %p58 = scmp.ne.s32.totalorder %s41, %s57
      %p59 = scmp.eq.s32.totalorder %s19, 0
      %p60 = por %p58, %p59
      %s61 = ssub.s32 %s20, %s32
      %s62 = ssub.s32 %s21, %s28
      %s63 = sor.u32 %s61, %s62
      %p64 = scmp.eq.s32.totalorder %s63, 0
      %s66 = sadd.s32 %s65, 1
      %s67 = scalar_select %p64, %s65, %s66
      %p70 = pneg %p64
      %p71 = scmp.eq.s32.totalorder %s13, 7
      %p72 = por %p70, %p71
      %p73 = scmp.ne.s32.totalorder %s65, %s68
      %p74 = scmp.eq.s32.totalorder %s13, 0
      %p75 = por %p73, %p74
      %p76 = scmp.ne.s32.totalorder %s65, %s68
      %p77 = scmp.eq.s32.totalorder %s18, 7
      %p78 = por %p76, %p77
      %p79 = scmp.ne.s32.totalorder %s68, %s69
      %p80 = scmp.eq.s32.totalorder %s18, 0
      %p81 = por %p79, %p80
      %p82 = scmp.ne.s32.totalorder %s68, %s69
      %p83 = scmp.eq.s32.totalorder %s19, 7
      %p84 = por %p82, %p83
      %p86 = scmp.ne.s32.totalorder %s69, %s85
      %p87 = scmp.eq.s32.totalorder %s19, 0
      %p88 = por %p86, %p87
      %p89 = scmp.le.s32.totalorder 1, %s13
      %p90 = scmp.lt.s32.totalorder %s13, 9
      %p91 = pnand %p89, %p90
      %p92 = pneg %p91
      // Predicated region
      $region9: #{tpu_custom_call.1} parent=5 // pred_check
        _
      $region10: #{tpu_custom_call.1} parent=5 // pred_check_branch
        %94 = sbr.rel (%p91) target = $region12
      $region11: #{tpu_custom_call.1} parent=5 // pred_region
        %s95 = ssub.s32 %s13, 1
      $region12: #{tpu_custom_call.1} parent=5 // pred_fallthru
        _
      %p96 = scmp.lt.s32.totalorder %s13, 8
      // Predicated region
      $region13: #{tpu_custom_call.1} parent=5 // pred_check
        %p97 = pneg %p96
      $region14: #{tpu_custom_call.1} parent=5 // pred_check_branch
        %99 = sbr.rel (%p97) target = $region16
      $region15: #{tpu_custom_call.1} parent=5 // pred_region
        // Predicated region
        $region17: #{tpu_custom_call.1} parent=15 // pred_check
          %p100 = pneg %p47
        $region18: #{tpu_custom_call.1} parent=15 // pred_check_branch
          %102 = sbr.rel (%p100) target = $region20
        $region19: #{tpu_custom_call.1} parent=15 // pred_region
          %s103 = sand.u32 %s37, 1
          %s104 = scalar_lea.sflag [#allocation3], %s103
          %s105 = sand.u32 %s37, 1
          %s106 = smul.addr %s105, 32
          %s107 = scalar_lea.vmem [#allocation2], %s106
          %s108 = smul.u32 4, %s21
          %s110 = ssub.s32 512, 512
          %111 = vsyncadd %s104, %s110
          %s112 = smul.addr %s20, 4
          %s113 = sadd.s32 %s108, %s112
          %s114 = smul.addr %s113, 128
          %s115 = scalar_lea.hbm %s0, %s114
          %s116 = sshll.u32 %s107, 4
          %s117 = int_to_ptr.vmem [resolvable:$true] %s116
          %122 = dma.hbm_to_vmem [thread:$0]  %s115, 512, %s117, %s104, 128, 128, 8
        $region20: #{tpu_custom_call.1} parent=15 // pred_fallthru
          _
      $region16: #{tpu_custom_call.1} parent=5 // pred_fallthru
        _
      %p123 = scmp.le.s32.totalorder 1, %s13
      %p124 = scmp.lt.s32.totalorder %s13, 9
      %p125 = pnand %p123, %p124
      %p126 = pneg %p125
      // Predicated region
      $region21: #{tpu_custom_call.1} parent=5 // pred_check
        _
      $region22: #{tpu_custom_call.1} parent=5 // pred_check_branch
        %128 = sbr.rel (%p125) target = $region24
      $region23: #{tpu_custom_call.1} parent=5 // pred_region
        %s129 = ssub.s32 %s13, 1
        %s130 = sand.u32 %s40, 1
        %s131 = scalar_lea.sflag [#allocation3], %s130
        %s132 = sand.u32 %s40, 1
        %s133 = smul.addr %s132, 32
        %s134 = scalar_lea.vmem [#allocation2], %s133
        // Predicated region
        $region25: #{tpu_custom_call.1} parent=23 // pred_check
          %p135 = pneg %p53
        $region26: #{tpu_custom_call.1} parent=23 // pred_check_branch
          %137 = sbr.rel (%p135) target = $region28
        $region27: #{tpu_custom_call.1} parent=23 // pred_region
          %138 = dma.done %s131, 512
        $region28: #{tpu_custom_call.1} parent=23 // pred_fallthru
          _
        %s139 = sand.u32 %s40, 1
        %s140 = scalar_lea.sflag [#allocation3], %s139
        %s141 = sand.u32 %s40, 1
        %s142 = smul.addr %s141, 32
        %s143 = scalar_lea.vmem [#allocation2], %s142
        %p144 = pneg %p53
        %p145 = pneg %p50
        %p146 = pneg %p81
        %p147 = pneg %p78
        %s148 = sand.u32 %s68, 1
        %s149 = scalar_lea.sflag [#allocation4], %s148
        %s150 = sand.u32 %s68, 1
        %s151 = smul.addr %s150, 16
        %s152 = scalar_lea.vmem [#allocation5], %s151
        %s153 = smul.u32 4, %s23
        %s154 = smul.u32 2, %s23
        %v155 = vlaneseq
        %v156 = vand.u32 %v155, 127
        %v157 = vlaneseq
        %v158 = vshrl.u32 %v157, 7
        %v159 = vadd.s32 %v158, 8
        %v160 = vadd.s32 %v158, 16
        %v161 = vadd.s32 %v158, 24
        %v162 = vmul.u32 %v156, 2
        %v163 = vld [vmem:[%s134] ss:$2 sm:$0xff]
        %s164 = scalar_lea.vmem %s134, 16 [#allocation2]
        %v165 = vld [vmem:[%s164] ss:$2 sm:$0xff]
        %s166 = scalar_lea.vmem %s134, 1 [#allocation2]
        %v167 = vld [vmem:[%s166] ss:$2 sm:$0xff]
        %s168 = scalar_lea.vmem %s134, 17 [#allocation2]
        %v169 = vld [vmem:[%s168] ss:$2 sm:$0xff]
        %v170 = vmax.f32 %v163, %v167
        %v171 = vmax.f32 %v165, %v169
        %vm172 = vcmp.eq.s32.totalorder %v158, %v162
        %vm173 = vcmp.eq.s32.totalorder %v159, %v162
        %vm174 = vcmp.eq.s32.totalorder %v160, %v162
        %vm175 = vcmp.eq.s32.totalorder %v161, %v162
        %v176 = vsel %vm172, 1, 0
        %v177 = vsel %vm173, 1, 0
        %v178 = vsel %vm174, 1, 0
        %v179 = vsel %vm175, 1, 0
        %v180 = vcvt.s32.f32 %v176
        %v181 = vcvt.s32.f32 %v177
        %v182 = vcvt.s32.f32 %v178
        %v183 = vcvt.s32.f32 %v179
        %vm184 = vcmask 261120
        %v186 = vsel %vm184, %v170, 0
        %v189 = vsel %vm184, %v171, 0
        %191 = vmatprep.subr.mxu0 0.0
        %192 = vmatpush1.msra.mxu0 0.0
        %193 = vmatprep.subr.mxu0 0.0
        %194 = vmatpush1.msra.mxu0 0.0
        %195 = vmatprep.subr.mxu0 0.0
        %196 = vmatpush1.msra.mxu0 0.0
        %197 = vmatprep.subr.mxu0 0.0
        %198 = vmatpush1.msra.mxu0 0.0
        %199 = vmatprep.subr.mxu0 0.0
        %200 = vmatpush1.msra.mxu0 0.0
        %201 = vmatprep.subr.mxu0 0.0
        %202 = vmatpush1.msra.mxu0 0.0
        %203 = vmatprep.subr.mxu0 0.0
        %204 = vmatpush1.msra.mxu0 0.0
        %205 = vmatprep.subr.mxu0 0.0
        %206 = vmatpush1.msra.mxu0 0.0
        %207 = vmatprep.subr.mxu0 0.0
        %208 = vmatpush1.msra.mxu0 0.0
        %209 = vmatprep.subr.mxu0 0.0
        %210 = vmatpush1.msra.mxu0 0.0
        %211 = vmatprep.subr.mxu0 0.0
        %212 = vmatpush1.msra.mxu0 0.0
        %213 = vmatprep.subr.mxu0 0.0
        %214 = vmatpush1.msra.mxu0 0.0
        %215 = vmatprep.subr.mxu0 0.0
        %v216 = vand.u32 %v183, 4294901760
        %217 = vmatpush1.msra.mxu0 %v216
        %218 = vmatprep.subr.mxu0 0.0
        %v219 = vand.u32 %v182, 4294901760
        %220 = vmatpush1.msra.mxu0 %v219
        %221 = vmatprep.subr.mxu0 0.0
        %v222 = vand.u32 %v181, 4294901760
        %223 = vmatpush1.msra.mxu0 %v222
        %224 = vmatprep.subr.mxu0 0.0
        %v225 = vand.u32 %v180, 4294901760
        %226 = vmatpush1.msra.mxu0 %v225
        %227 = vmatprep.subr.mxu0 0.0
        %228 = vmatpush2.msra.mxu0 0.0
        %229 = vmatprep.subr.mxu0 0.0
        %230 = vmatpush2.msra.mxu0 0.0
        %231 = vmatprep.subr.mxu0 0.0
        %232 = vmatpush2.msra.mxu0 0.0
        %233 = vmatprep.subr.mxu0 0.0
        %234 = vmatpush2.msra.mxu0 0.0
        %235 = vmatprep.subr.mxu0 0.0
        %236 = vmatpush2.msra.mxu0 0.0
        %237 = vmatprep.subr.mxu0 0.0
        %238 = vmatpush2.msra.mxu0 0.0
        %239 = vmatprep.subr.mxu0 0.0
        %240 = vmatpush2.msra.mxu0 0.0
        %241 = vmatprep.subr.mxu0 0.0
        %242 = vmatpush2.msra.mxu0 0.0
        %243 = vmatprep.subr.mxu0 0.0
        %244 = vmatpush2.msra.mxu0 0.0
        %245 = vmatprep.subr.mxu0 0.0
        %246 = vmatpush2.msra.mxu0 0.0
        %247 = vmatprep.subr.mxu0 0.0
        %248 = vmatpush2.msra.mxu0 0.0
        %249 = vmatprep.subr.mxu0 0.0
        %250 = vmatpush2.msra.mxu0 0.0
        %251 = vmatprep.subr.mxu0 0.0
        %252 = vmatpush2.msra.mxu0 0.0
        %253 = vmatprep.subr.mxu0 0.0
        %254 = vmatpush2.msra.mxu0 0.0
        %255 = vmatprep.subr.mxu0 0.0
        %256 = vmatpush2.msra.mxu0 0.0
        %257 = vmatprep.subr.mxu0 0.0
        %258 = vmatpush2.msra.mxu0 0.0
        %259 = vmatprep.mubr.f32.mxu0 0.0
        %v260 = vand.u32 %v186, 4294901760
        %v261 = vsub.f32 %v186, %v260
        %v262 = vand.u32 %v261, 4294901760
        %v263 = vsub.f32 %v261, %v262
        %v264 = vand.u32 %v263, 4294901760
        %265 = vmatmul.mubr.f32.gmra.mxu0 %v264
        %v266 = vpop.f32.mrf.mxu0
        %v267 = vadd.f32 0.0, %v266
        %v268 = vpop.f32.mrf.mxu0
        %269 = vmatprep.mubr.f32.mxu0 0.0
        %v270 = vand.u32 %v189, 4294901760
        %v271 = vsub.f32 %v189, %v270
        %v272 = vand.u32 %v271, 4294901760
        %v273 = vsub.f32 %v271, %v272
        %v274 = vand.u32 %v273, 4294901760
        %275 = vmatmul.mubr.f32.gmra.mxu0 %v274
        %v276 = vpop.f32.mrf.mxu0
        %v277 = vadd.f32 0.0, %v276
        %v278 = vpop.f32.mrf.mxu0
        %279 = vdwg.mxu0
        %280 = vmatprep.subr.mxu0 0.0
        %281 = vmatpush1.msra.mxu0 0.0
        %282 = vmatprep.subr.mxu0 0.0
        %283 = vmatpush1.msra.mxu0 0.0
        %284 = vmatprep.subr.mxu0 0.0
        %285 = vmatpush1.msra.mxu0 0.0
        %286 = vmatprep.subr.mxu0 0.0
        %287 = vmatpush1.msra.mxu0 0.0
        %288 = vmatprep.subr.mxu0 0.0
        %289 = vmatpush1.msra.mxu0 0.0
        %290 = vmatprep.subr.mxu0 0.0
        %291 = vmatpush1.msra.mxu0 0.0
        %292 = vmatprep.subr.mxu0 0.0
        %293 = vmatpush1.msra.mxu0 0.0
        %294 = vmatprep.subr.mxu0 0.0
        %295 = vmatpush1.msra.mxu0 0.0
        %296 = vmatprep.subr.mxu0 0.0
        %297 = vmatpush1.msra.mxu0 0.0
        %298 = vmatprep.subr.mxu0 0.0
        %299 = vmatpush1.msra.mxu0 0.0
        %300 = vmatprep.subr.mxu0 0.0
        %301 = vmatpush1.msra.mxu0 0.0
        %302 = vmatprep.subr.mxu0 0.0
        %303 = vmatpush1.msra.mxu0 0.0
        %304 = vmatprep.subr.mxu0 0.0
        %v305 = vand.u32 %v183, 4294901760
        %v306 = vsub.f32 %v183, %v305
        %v307 = vand.u32 %v306, 4294901760
        %v308 = vsub.f32 %v306, %v307
        %v309 = vand.u32 %v308, 4294901760
        %310 = vmatpush1.msra.mxu0 %v309
        %311 = vmatprep.subr.mxu0 0.0
        %v312 = vand.u32 %v182, 4294901760
        %v313 = vsub.f32 %v182, %v312
        %v314 = vand.u32 %v313, 4294901760
        %v315 = vsub.f32 %v313, %v314
        %v316 = vand.u32 %v315, 4294901760
        %317 = vmatpush1.msra.mxu0 %v316
        %318 = vmatprep.subr.mxu0 0.0
        %v319 = vand.u32 %v181, 4294901760
        %v320 = vsub.f32 %v181, %v319
        %v321 = vand.u32 %v320, 4294901760
        %v322 = vsub.f32 %v320, %v321
        %v323 = vand.u32 %v322, 4294901760
        %324 = vmatpush1.msra.mxu0 %v323
        %325 = vmatprep.subr.mxu0 0.0
        %v326 = vand.u32 %v180, 4294901760
        %v327 = vsub.f32 %v180, %v326
        %v328 = vand.u32 %v327, 4294901760
        %v329 = vsub.f32 %v327, %v328
        %v330 = vand.u32 %v329, 4294901760
        %331 = vmatpush1.msra.mxu0 %v330
        %332 = vmatprep.subr.mxu0 0.0
        %333 = vmatpush2.msra.mxu0 0.0
        %334 = vmatprep.subr.mxu0 0.0
        %335 = vmatpush2.msra.mxu0 0.0
        %336 = vmatprep.subr.mxu0 0.0
        %337 = vmatpush2.msra.mxu0 0.0
        %338 = vmatprep.subr.mxu0 0.0
        %339 = vmatpush2.msra.mxu0 0.0
        %340 = vmatprep.subr.mxu0 0.0
        %341 = vmatpush2.msra.mxu0 0.0
        %342 = vmatprep.subr.mxu0 0.0
        %343 = vmatpush2.msra.mxu0 0.0
        %344 = vmatprep.subr.mxu0 0.0
        %345 = vmatpush2.msra.mxu0 0.0
        %346 = vmatprep.subr.mxu0 0.0
        %347 = vmatpush2.msra.mxu0 0.0
        %348 = vmatprep.subr.mxu0 0.0
        %349 = vmatpush2.msra.mxu0 0.0
        %350 = vmatprep.subr.mxu0 0.0
        %351 = vmatpush2.msra.mxu0 0.0
        %352 = vmatprep.subr.mxu0 0.0
        %353 = vmatpush2.msra.mxu0 0.0
        %354 = vmatprep.subr.mxu0 0.0
        %355 = vmatpush2.msra.mxu0 0.0
        %356 = vmatprep.subr.mxu0 0.0
        %357 = vmatpush2.msra.mxu0 0.0
        %358 = vmatprep.subr.mxu0 0.0
        %359 = vmatpush2.msra.mxu0 0.0
        %360 = vmatprep.subr.mxu0 0.0
        %361 = vmatpush2.msra.mxu0 0.0
        %362 = vmatprep.subr.mxu0 0.0
        %363 = vmatpush2.msra.mxu0 0.0
        %364 = vmatprep.mubr.f32.mxu0 0.0
        %v365 = vand.u32 %v186, 4294901760
        %366 = vmatmul.mubr.f32.gmra.mxu0 %v365
        %v367 = vpop.f32.mrf.mxu0
        %v368 = vadd.f32 %v267, %v367
        %v369 = vpop.f32.mrf.mxu0
        %370 = vmatprep.mubr.f32.mxu0 0.0
        %v371 = vand.u32 %v189, 4294901760
        %372 = vmatmul.mubr.f32.gmra.mxu0 %v371
        %v373 = vpop.f32.mrf.mxu0
        %v374 = vadd.f32 %v277, %v373
        %v375 = vpop.f32.mrf.mxu0
        %376 = vdwg.mxu0
        %377 = vmatprep.subr.mxu0 0.0
        %378 = vmatpush1.msra.mxu0 0.0
        %379 = vmatprep.subr.mxu0 0.0
        %380 = vmatpush1.msra.mxu0 0.0
        %381 = vmatprep.subr.mxu0 0.0
        %382 = vmatpush1.msra.mxu0 0.0
        %383 = vmatprep.subr.mxu0 0.0
        %384 = vmatpush1.msra.mxu0 0.0
        %385 = vmatprep.subr.mxu0 0.0
        %386 = vmatpush1.msra.mxu0 0.0
        %387 = vmatprep.subr.mxu0 0.0
        %388 = vmatpush1.msra.mxu0 0.0
        %389 = vmatprep.subr.mxu0 0.0
        %390 = vmatpush1.msra.mxu0 0.0
        %391 = vmatprep.subr.mxu0 0.0
        %392 = vmatpush1.msra.mxu0 0.0
        %393 = vmatprep.subr.mxu0 0.0
        %394 = vmatpush1.msra.mxu0 0.0
        %395 = vmatprep.subr.mxu0 0.0
        %396 = vmatpush1.msra.mxu0 0.0
        %397 = vmatprep.subr.mxu0 0.0
        %398 = vmatpush1.msra.mxu0 0.0
        %399 = vmatprep.subr.mxu0 0.0
        %400 = vmatpush1.msra.mxu0 0.0
        %401 = vmatprep.subr.mxu0 0.0
        %v402 = vand.u32 %v183, 4294901760
        %v403 = vsub.f32 %v183, %v402
        %404 = vmatpush1.msra.mxu0 %v403
        %405 = vmatprep.subr.mxu0 0.0
        %v406 = vand.u32 %v182, 4294901760
        %v407 = vsub.f32 %v182, %v406
        %408 = vmatpush1.msra.mxu0 %v407
        %409 = vmatprep.subr.mxu0 0.0
        %v410 = vand.u32 %v181, 4294901760
        %v411 = vsub.f32 %v181, %v410
        %412 = vmatpush1.msra.mxu0 %v411
        %413 = vmatprep.subr.mxu0 0.0
        %v414 = vand.u32 %v180, 4294901760
        %v415 = vsub.f32 %v180, %v414
        %416 = vmatpush1.msra.mxu0 %v415
        %417 = vmatprep.subr.mxu0 0.0
        %418 = vmatpush2.msra.mxu0 0.0
        %419 = vmatprep.subr.mxu0 0.0
        %420 = vmatpush2.msra.mxu0 0.0
        %421 = vmatprep.subr.mxu0 0.0
        %422 = vmatpush2.msra.mxu0 0.0
        %423 = vmatprep.subr.mxu0 0.0
        %424 = vmatpush2.msra.mxu0 0.0
        %425 = vmatprep.subr.mxu0 0.0
        %426 = vmatpush2.msra.mxu0 0.0
        %427 = vmatprep.subr.mxu0 0.0
        %428 = vmatpush2.msra.mxu0 0.0
        %429 = vmatprep.subr.mxu0 0.0
        %430 = vmatpush2.msra.mxu0 0.0
        %431 = vmatprep.subr.mxu0 0.0
        %432 = vmatpush2.msra.mxu0 0.0
        %433 = vmatprep.subr.mxu0 0.0
        %434 = vmatpush2.msra.mxu0 0.0
        %435 = vmatprep.subr.mxu0 0.0
        %436 = vmatpush2.msra.mxu0 0.0
        %437 = vmatprep.subr.mxu0 0.0
        %438 = vmatpush2.msra.mxu0 0.0
        %439 = vmatprep.subr.mxu0 0.0
        %440 = vmatpush2.msra.mxu0 0.0
        %441 = vmatprep.subr.mxu0 0.0
        %442 = vmatpush2.msra.mxu0 0.0
        %443 = vmatprep.subr.mxu0 0.0
        %444 = vmatpush2.msra.mxu0 0.0
        %445 = vmatprep.subr.mxu0 0.0
        %446 = vmatpush2.msra.mxu0 0.0
        %447 = vmatprep.subr.mxu0 0.0
        %448 = vmatpush2.msra.mxu0 0.0
        %449 = vmatprep.mubr.f32.mxu0 0.0
        %v450 = vand.u32 %v186, 4294901760
        %v451 = vsub.f32 %v186, %v450
        %452 = vmatmul.mubr.f32.gmra.mxu0 %v451
        %v453 = vpop.f32.mrf.mxu0
        %v454 = vadd.f32 %v368, %v453
        %v455 = vpop.f32.mrf.mxu0
        %456 = vmatprep.mubr.f32.mxu0 0.0
        %v457 = vand.u32 %v189, 4294901760
        %v458 = vsub.f32 %v189, %v457
        %459 = vmatmul.mubr.f32.gmra.mxu0 %v458
        %v460 = vpop.f32.mrf.mxu0
        %v461 = vadd.f32 %v374, %v460
        %v462 = vpop.f32.mrf.mxu0
        %463 = vdwg.mxu0
        %464 = vmatprep.subr.mxu0 0.0
        %465 = vmatpush1.msra.mxu0 0.0
        %466 = vmatprep.subr.mxu0 0.0
        %467 = vmatpush1.msra.mxu0 0.0
        %468 = vmatprep.subr.mxu0 0.0
        %469 = vmatpush1.msra.mxu0 0.0
        %470 = vmatprep.subr.mxu0 0.0
        %471 = vmatpush1.msra.mxu0 0.0
        %472 = vmatprep.subr.mxu0 0.0
        %473 = vmatpush1.msra.mxu0 0.0
        %474 = vmatprep.subr.mxu0 0.0
        %475 = vmatpush1.msra.mxu0 0.0
        %476 = vmatprep.subr.mxu0 0.0
        %477 = vmatpush1.msra.mxu0 0.0
        %478 = vmatprep.subr.mxu0 0.0
        %479 = vmatpush1.msra.mxu0 0.0
        %480 = vmatprep.subr.mxu0 0.0
        %481 = vmatpush1.msra.mxu0 0.0
        %482 = vmatprep.subr.mxu0 0.0
        %483 = vmatpush1.msra.mxu0 0.0
        %484 = vmatprep.subr.mxu0 0.0
        %485 = vmatpush1.msra.mxu0 0.0
        %486 = vmatprep.subr.mxu0 0.0
        %487 = vmatpush1.msra.mxu0 0.0
        %488 = vmatprep.subr.mxu0 0.0
        %v489 = vand.u32 %v183, 4294901760
        %490 = vmatpush1.msra.mxu0 %v489
        %491 = vmatprep.subr.mxu0 0.0
        %v492 = vand.u32 %v182, 4294901760
        %493 = vmatpush1.msra.mxu0 %v492
        %494 = vmatprep.subr.mxu0 0.0
        %v495 = vand.u32 %v181, 4294901760
        %496 = vmatpush1.msra.mxu0 %v495
        %497 = vmatprep.subr.mxu0 0.0
        %v498 = vand.u32 %v180, 4294901760
        %499 = vmatpush1.msra.mxu0 %v498
        %500 = vmatprep.subr.mxu0 0.0
        %501 = vmatpush2.msra.mxu0 0.0
        %502 = vmatprep.subr.mxu0 0.0
        %503 = vmatpush2.msra.mxu0 0.0
        %504 = vmatprep.subr.mxu0 0.0
        %505 = vmatpush2.msra.mxu0 0.0
        %506 = vmatprep.subr.mxu0 0.0
        %507 = vmatpush2.msra.mxu0 0.0
        %508 = vmatprep.subr.mxu0 0.0
        %509 = vmatpush2.msra.mxu0 0.0
        %510 = vmatprep.subr.mxu0 0.0
        %511 = vmatpush2.msra.mxu0 0.0
        %512 = vmatprep.subr.mxu0 0.0
        %513 = vmatpush2.msra.mxu0 0.0
        %514 = vmatprep.subr.mxu0 0.0
        %515 = vmatpush2.msra.mxu0 0.0
        %516 = vmatprep.subr.mxu0 0.0
        %517 = vmatpush2.msra.mxu0 0.0
        %518 = vmatprep.subr.mxu0 0.0
        %519 = vmatpush2.msra.mxu0 0.0
        %520 = vmatprep.subr.mxu0 0.0
        %521 = vmatpush2.msra.mxu0 0.0
        %522 = vmatprep.subr.mxu0 0.0
        %523 = vmatpush2.msra.mxu0 0.0
        %524 = vmatprep.subr.mxu0 0.0
        %525 = vmatpush2.msra.mxu0 0.0
        %526 = vmatprep.subr.mxu0 0.0
        %527 = vmatpush2.msra.mxu0 0.0
        %528 = vmatprep.subr.mxu0 0.0
        %529 = vmatpush2.msra.mxu0 0.0
        %530 = vmatprep.subr.mxu0 0.0
        %531 = vmatpush2.msra.mxu0 0.0
        %532 = vmatprep.mubr.f32.mxu0 0.0
        %v533 = vand.u32 %v186, 4294901760
        %v534 = vsub.f32 %v186, %v533
        %v535 = vand.u32 %v534, 4294901760
        %536 = vmatmul.mubr.f32.gmra.mxu0 %v535
        %v537 = vpop.f32.mrf.mxu0
        %v538 = vadd.f32 %v454, %v537
        %v539 = vpop.f32.mrf.mxu0
        %540 = vmatprep.mubr.f32.mxu0 0.0
        %v541 = vand.u32 %v189, 4294901760
        %v542 = vsub.f32 %v189, %v541
        %v543 = vand.u32 %v542, 4294901760
        %544 = vmatmul.mubr.f32.gmra.mxu0 %v543
        %v545 = vpop.f32.mrf.mxu0
        %v546 = vadd.f32 %v461, %v545
        %v547 = vpop.f32.mrf.mxu0
        %548 = vdwg.mxu0
        %549 = vmatprep.subr.mxu0 0.0
        %550 = vmatpush1.msra.mxu0 0.0
        %551 = vmatprep.subr.mxu0 0.0
        %552 = vmatpush1.msra.mxu0 0.0
        %553 = vmatprep.subr.mxu0 0.0
        %554 = vmatpush1.msra.mxu0 0.0
        %555 = vmatprep.subr.mxu0 0.0
        %556 = vmatpush1.msra.mxu0 0.0
        %557 = vmatprep.subr.mxu0 0.0
        %558 = vmatpush1.msra.mxu0 0.0
        %559 = vmatprep.subr.mxu0 0.0
        %560 = vmatpush1.msra.mxu0 0.0
        %561 = vmatprep.subr.mxu0 0.0
        %562 = vmatpush1.msra.mxu0 0.0
        %563 = vmatprep.subr.mxu0 0.0
        %564 = vmatpush1.msra.mxu0 0.0
        %565 = vmatprep.subr.mxu0 0.0
        %566 = vmatpush1.msra.mxu0 0.0
        %567 = vmatprep.subr.mxu0 0.0
        %568 = vmatpush1.msra.mxu0 0.0
        %569 = vmatprep.subr.mxu0 0.0
        %570 = vmatpush1.msra.mxu0 0.0
        %571 = vmatprep.subr.mxu0 0.0
        %572 = vmatpush1.msra.mxu0 0.0
        %573 = vmatprep.subr.mxu0 0.0
        %v574 = vand.u32 %v183, 4294901760
        %v575 = vsub.f32 %v183, %v574
        %v576 = vand.u32 %v575, 4294901760
        %577 = vmatpush1.msra.mxu0 %v576
        %578 = vmatprep.subr.mxu0 0.0
        %v579 = vand.u32 %v182, 4294901760
        %v580 = vsub.f32 %v182, %v579
        %v581 = vand.u32 %v580, 4294901760
        %582 = vmatpush1.msra.mxu0 %v581
        %583 = vmatprep.subr.mxu0 0.0
        %v584 = vand.u32 %v181, 4294901760
        %v585 = vsub.f32 %v181, %v584
        %v586 = vand.u32 %v585, 4294901760
        %587 = vmatpush1.msra.mxu0 %v586
        %588 = vmatprep.subr.mxu0 0.0
        %v589 = vand.u32 %v180, 4294901760
        %v590 = vsub.f32 %v180, %v589
        %v591 = vand.u32 %v590, 4294901760
        %592 = vmatpush1.msra.mxu0 %v591
        %593 = vmatprep.subr.mxu0 0.0
        %594 = vmatpush2.msra.mxu0 0.0
        %595 = vmatprep.subr.mxu0 0.0
        %596 = vmatpush2.msra.mxu0 0.0
        %597 = vmatprep.subr.mxu0 0.0
        %598 = vmatpush2.msra.mxu0 0.0
        %599 = vmatprep.subr.mxu0 0.0
        %600 = vmatpush2.msra.mxu0 0.0
        %601 = vmatprep.subr.mxu0 0.0
        %602 = vmatpush2.msra.mxu0 0.0
        %603 = vmatprep.subr.mxu0 0.0
        %604 = vmatpush2.msra.mxu0 0.0
        %605 = vmatprep.subr.mxu0 0.0
        %606 = vmatpush2.msra.mxu0 0.0
        %607 = vmatprep.subr.mxu0 0.0
        %608 = vmatpush2.msra.mxu0 0.0
        %609 = vmatprep.subr.mxu0 0.0
        %610 = vmatpush2.msra.mxu0 0.0
        %611 = vmatprep.subr.mxu0 0.0
        %612 = vmatpush2.msra.mxu0 0.0
        %613 = vmatprep.subr.mxu0 0.0
        %614 = vmatpush2.msra.mxu0 0.0
        %615 = vmatprep.subr.mxu0 0.0
        %616 = vmatpush2.msra.mxu0 0.0
        %617 = vmatprep.subr.mxu0 0.0
        %618 = vmatpush2.msra.mxu0 0.0
        %619 = vmatprep.subr.mxu0 0.0
        %620 = vmatpush2.msra.mxu0 0.0
        %621 = vmatprep.subr.mxu0 0.0
        %622 = vmatpush2.msra.mxu0 0.0
        %623 = vmatprep.subr.mxu0 0.0
        %624 = vmatpush2.msra.mxu0 0.0
        %625 = vmatprep.mubr.f32.mxu0 0.0
        %v626 = vand.u32 %v186, 4294901760
        %627 = vmatmul.mubr.f32.gmra.mxu0 %v626
        %v628 = vpop.f32.mrf.mxu0
        %v629 = vadd.f32 %v538, %v628
        %v630 = vpop.f32.mrf.mxu0
        %631 = vmatprep.mubr.f32.mxu0 0.0
        %v632 = vand.u32 %v189, 4294901760
        %633 = vmatmul.mubr.f32.gmra.mxu0 %v632
        %v634 = vpop.f32.mrf.mxu0
        %v635 = vadd.f32 %v546, %v634
        %v636 = vpop.f32.mrf.mxu0
        %637 = vdwg.mxu0
        %638 = vmatprep.subr.mxu0 0.0
        %639 = vmatpush1.msra.mxu0 0.0
        %640 = vmatprep.subr.mxu0 0.0
        %641 = vmatpush1.msra.mxu0 0.0
        %642 = vmatprep.subr.mxu0 0.0
        %643 = vmatpush1.msra.mxu0 0.0
        %644 = vmatprep.subr.mxu0 0.0
        %645 = vmatpush1.msra.mxu0 0.0
        %646 = vmatprep.subr.mxu0 0.0
        %647 = vmatpush1.msra.mxu0 0.0
        %648 = vmatprep.subr.mxu0 0.0
        %649 = vmatpush1.msra.mxu0 0.0
        %650 = vmatprep.subr.mxu0 0.0
        %651 = vmatpush1.msra.mxu0 0.0
        %652 = vmatprep.subr.mxu0 0.0
        %653 = vmatpush1.msra.mxu0 0.0
        %654 = vmatprep.subr.mxu0 0.0
        %655 = vmatpush1.msra.mxu0 0.0
        %656 = vmatprep.subr.mxu0 0.0
        %657 = vmatpush1.msra.mxu0 0.0
        %658 = vmatprep.subr.mxu0 0.0
        %659 = vmatpush1.msra.mxu0 0.0
        %660 = vmatprep.subr.mxu0 0.0
        %661 = vmatpush1.msra.mxu0 0.0
        %662 = vmatprep.subr.mxu0 0.0
        %v663 = vand.u32 %v183, 4294901760
        %664 = vmatpush1.msra.mxu0 %v663
        %665 = vmatprep.subr.mxu0 0.0
        %v666 = vand.u32 %v182, 4294901760
        %667 = vmatpush1.msra.mxu0 %v666
        %668 = vmatprep.subr.mxu0 0.0
        %v669 = vand.u32 %v181, 4294901760
        %670 = vmatpush1.msra.mxu0 %v669
        %671 = vmatprep.subr.mxu0 0.0
        %v672 = vand.u32 %v180, 4294901760
        %673 = vmatpush1.msra.mxu0 %v672
        %674 = vmatprep.subr.mxu0 0.0
        %675 = vmatpush2.msra.mxu0 0.0
        %676 = vmatprep.subr.mxu0 0.0
        %677 = vmatpush2.msra.mxu0 0.0
        %678 = vmatprep.subr.mxu0 0.0
        %679 = vmatpush2.msra.mxu0 0.0
        %680 = vmatprep.subr.mxu0 0.0
        %681 = vmatpush2.msra.mxu0 0.0
        %682 = vmatprep.subr.mxu0 0.0
        %683 = vmatpush2.msra.mxu0 0.0
        %684 = vmatprep.subr.mxu0 0.0
        %685 = vmatpush2.msra.mxu0 0.0
        %686 = vmatprep.subr.mxu0 0.0
        %687 = vmatpush2.msra.mxu0 0.0
        %688 = vmatprep.subr.mxu0 0.0
        %689 = vmatpush2.msra.mxu0 0.0
        %690 = vmatprep.subr.mxu0 0.0
        %691 = vmatpush2.msra.mxu0 0.0
        %692 = vmatprep.subr.mxu0 0.0
        %693 = vmatpush2.msra.mxu0 0.0
        %694 = vmatprep.subr.mxu0 0.0
        %695 = vmatpush2.msra.mxu0 0.0
        %696 = vmatprep.subr.mxu0 0.0
        %697 = vmatpush2.msra.mxu0 0.0
        %698 = vmatprep.subr.mxu0 0.0
        %699 = vmatpush2.msra.mxu0 0.0
        %700 = vmatprep.subr.mxu0 0.0
        %701 = vmatpush2.msra.mxu0 0.0
        %702 = vmatprep.subr.mxu0 0.0
        %703 = vmatpush2.msra.mxu0 0.0
        %704 = vmatprep.subr.mxu0 0.0
        %705 = vmatpush2.msra.mxu0 0.0
        %706 = vmatprep.mubr.f32.mxu0 0.0
        %v707 = vand.u32 %v186, 4294901760
        %708 = vmatmul.mubr.f32.gmra.mxu0 %v707
        %v709 = vpop.f32.mrf.mxu0
        %v710 = vadd.f32 %v629, %v709
        %v711 = vpop.f32.mrf.mxu0
        %712 = vmatprep.mubr.f32.mxu0 0.0
        %v713 = vand.u32 %v189, 4294901760
        %714 = vmatmul.mubr.f32.gmra.mxu0 %v713
        %v715 = vpop.f32.mrf.mxu0
        %v716 = vadd.f32 %v635, %v715
        %v717 = vpop.f32.mrf.mxu0
        %718 = vdwg.mxu0
        %v719 = vadd.s32 %v162, 1
        %vm720 = vcmp.eq.s32.totalorder %v158, %v719
        %vm721 = vcmp.eq.s32.totalorder %v159, %v719
        %vm722 = vcmp.eq.s32.totalorder %v160, %v719
        %vm723 = vcmp.eq.s32.totalorder %v161, %v719
        %v724 = vsel %vm720, 1, 0
        %v725 = vsel %vm721, 1, 0
        %v726 = vsel %vm722, 1, 0
        %v727 = vsel %vm723, 1, 0
        %v728 = vcvt.s32.f32 %v724
        %v729 = vcvt.s32.f32 %v725
        %v730 = vcvt.s32.f32 %v726
        %v731 = vcvt.s32.f32 %v727
        %732 = vmatprep.subr.mxu0 0.0
        %733 = vmatpush1.msra.mxu0 0.0
        %734 = vmatprep.subr.mxu0 0.0
        %735 = vmatpush1.msra.mxu0 0.0
        %736 = vmatprep.subr.mxu0 0.0
        %737 = vmatpush1.msra.mxu0 0.0
        %738 = vmatprep.subr.mxu0 0.0
        %739 = vmatpush1.msra.mxu0 0.0
        %740 = vmatprep.subr.mxu0 0.0
        %741 = vmatpush1.msra.mxu0 0.0
        %742 = vmatprep.subr.mxu0 0.0
        %743 = vmatpush1.msra.mxu0 0.0
        %744 = vmatprep.subr.mxu0 0.0
        %745 = vmatpush1.msra.mxu0 0.0
        %746 = vmatprep.subr.mxu0 0.0
        %747 = vmatpush1.msra.mxu0 0.0
        %748 = vmatprep.subr.mxu0 0.0
        %749 = vmatpush1.msra.mxu0 0.0
        %750 = vmatprep.subr.mxu0 0.0
        %751 = vmatpush1.msra.mxu0 0.0
        %752 = vmatprep.subr.mxu0 0.0
        %753 = vmatpush1.msra.mxu0 0.0
        %754 = vmatprep.subr.mxu0 0.0
        %755 = vmatpush1.msra.mxu0 0.0
        %756 = vmatprep.subr.mxu0 0.0
        %v757 = vand.u32 %v731, 4294901760
        %758 = vmatpush1.msra.mxu0 %v757
        %759 = vmatprep.subr.mxu0 0.0
        %v760 = vand.u32 %v730, 4294901760
        %761 = vmatpush1.msra.mxu0 %v760
        %762 = vmatprep.subr.mxu0 0.0
        %v763 = vand.u32 %v729, 4294901760
        %764 = vmatpush1.msra.mxu0 %v763
        %765 = vmatprep.subr.mxu0 0.0
        %v766 = vand.u32 %v728, 4294901760
        %767 = vmatpush1.msra.mxu0 %v766
        %768 = vmatprep.subr.mxu0 0.0
        %769 = vmatpush2.msra.mxu0 0.0
        %770 = vmatprep.subr.mxu0 0.0
        %771 = vmatpush2.msra.mxu0 0.0
        %772 = vmatprep.subr.mxu0 0.0
        %773 = vmatpush2.msra.mxu0 0.0
        %774 = vmatprep.subr.mxu0 0.0
        %775 = vmatpush2.msra.mxu0 0.0
        %776 = vmatprep.subr.mxu0 0.0
        %777 = vmatpush2.msra.mxu0 0.0
        %778 = vmatprep.subr.mxu0 0.0
        %779 = vmatpush2.msra.mxu0 0.0
        %780 = vmatprep.subr.mxu0 0.0
        %781 = vmatpush2.msra.mxu0 0.0
        %782 = vmatprep.subr.mxu0 0.0
        %783 = vmatpush2.msra.mxu0 0.0
        %784 = vmatprep.subr.mxu0 0.0
        %785 = vmatpush2.msra.mxu0 0.0
        %786 = vmatprep.subr.mxu0 0.0
        %787 = vmatpush2.msra.mxu0 0.0
        %788 = vmatprep.subr.mxu0 0.0
        %789 = vmatpush2.msra.mxu0 0.0
        %790 = vmatprep.subr.mxu0 0.0
        %791 = vmatpush2.msra.mxu0 0.0
        %792 = vmatprep.subr.mxu0 0.0
        %793 = vmatpush2.msra.mxu0 0.0
        %794 = vmatprep.subr.mxu0 0.0
        %795 = vmatpush2.msra.mxu0 0.0
        %796 = vmatprep.subr.mxu0 0.0
        %797 = vmatpush2.msra.mxu0 0.0
        %798 = vmatprep.subr.mxu0 0.0
        %799 = vmatpush2.msra.mxu0 0.0
        %800 = vmatprep.mubr.f32.mxu0 0.0
        %v801 = vand.u32 %v186, 4294901760
        %v802 = vsub.f32 %v186, %v801
        %v803 = vand.u32 %v802, 4294901760
        %v804 = vsub.f32 %v802, %v803
        %v805 = vand.u32 %v804, 4294901760
        %806 = vmatmul.mubr.f32.gmra.mxu0 %v805
        %v807 = vpop.f32.mrf.mxu0
        %v808 = vadd.f32 0.0, %v807
        %v809 = vpop.f32.mrf.mxu0
        %810 = vmatprep.mubr.f32.mxu0 0.0
        %v811 = vand.u32 %v189, 4294901760
        %v812 = vsub.f32 %v189, %v811
        %v813 = vand.u32 %v812, 4294901760
        %v814 = vsub.f32 %v812, %v813
        %v815 = vand.u32 %v814, 4294901760
        %816 = vmatmul.mubr.f32.gmra.mxu0 %v815
        %v817 = vpop.f32.mrf.mxu0
        %v818 = vadd.f32 0.0, %v817
        %v819 = vpop.f32.mrf.mxu0
        %820 = vdwg.mxu0
        %821 = vmatprep.subr.mxu0 0.0
        %822 = vmatpush1.msra.mxu0 0.0
        %823 = vmatprep.subr.mxu0 0.0
        %824 = vmatpush1.msra.mxu0 0.0
        %825 = vmatprep.subr.mxu0 0.0
        %826 = vmatpush1.msra.mxu0 0.0
        %827 = vmatprep.subr.mxu0 0.0
        %828 = vmatpush1.msra.mxu0 0.0
        %829 = vmatprep.subr.mxu0 0.0
        %830 = vmatpush1.msra.mxu0 0.0
        %831 = vmatprep.subr.mxu0 0.0
        %832 = vmatpush1.msra.mxu0 0.0
        %833 = vmatprep.subr.mxu0 0.0
        %834 = vmatpush1.msra.mxu0 0.0
        %835 = vmatprep.subr.mxu0 0.0
        %836 = vmatpush1.msra.mxu0 0.0
        %837 = vmatprep.subr.mxu0 0.0
        %838 = vmatpush1.msra.mxu0 0.0
        %839 = vmatprep.subr.mxu0 0.0
        %840 = vmatpush1.msra.mxu0 0.0
        %841 = vmatprep.subr.mxu0 0.0
        %842 = vmatpush1.msra.mxu0 0.0
        %843 = vmatprep.subr.mxu0 0.0
        %844 = vmatpush1.msra.mxu0 0.0
        %845 = vmatprep.subr.mxu0 0.0
        %v846 = vand.u32 %v731, 4294901760
        %v847 = vsub.f32 %v731, %v846
        %v848 = vand.u32 %v847, 4294901760
        %v849 = vsub.f32 %v847, %v848
        %v850 = vand.u32 %v849, 4294901760
        %851 = vmatpush1.msra.mxu0 %v850
        %852 = vmatprep.subr.mxu0 0.0
        %v853 = vand.u32 %v730, 4294901760
        %v854 = vsub.f32 %v730, %v853
        %v855 = vand.u32 %v854, 4294901760
        %v856 = vsub.f32 %v854, %v855
        %v857 = vand.u32 %v856, 4294901760
        %858 = vmatpush1.msra.mxu0 %v857
        %859 = vmatprep.subr.mxu0 0.0
        %v860 = vand.u32 %v729, 4294901760
        %v861 = vsub.f32 %v729, %v860
        %v862 = vand.u32 %v861, 4294901760
        %v863 = vsub.f32 %v861, %v862
        %v864 = vand.u32 %v863, 4294901760
        %865 = vmatpush1.msra.mxu0 %v864
        %866 = vmatprep.subr.mxu0 0.0
        %v867 = vand.u32 %v728, 4294901760
        %v868 = vsub.f32 %v728, %v867
        %v869 = vand.u32 %v868, 4294901760
        %v870 = vsub.f32 %v868, %v869
        %v871 = vand.u32 %v870, 4294901760
        %872 = vmatpush1.msra.mxu0 %v871
        %873 = vmatprep.subr.mxu0 0.0
        %874 = vmatpush2.msra.mxu0 0.0
        %875 = vmatprep.subr.mxu0 0.0
        %876 = vmatpush2.msra.mxu0 0.0
        %877 = vmatprep.subr.mxu0 0.0
        %878 = vmatpush2.msra.mxu0 0.0
        %879 = vmatprep.subr.mxu0 0.0
        %880 = vmatpush2.msra.mxu0 0.0
        %881 = vmatprep.subr.mxu0 0.0
        %882 = vmatpush2.msra.mxu0 0.0
        %883 = vmatprep.subr.mxu0 0.0
        %884 = vmatpush2.msra.mxu0 0.0
        %885 = vmatprep.subr.mxu0 0.0
        %886 = vmatpush2.msra.mxu0 0.0
        %887 = vmatprep.subr.mxu0 0.0
        %888 = vmatpush2.msra.mxu0 0.0
        %889 = vmatprep.subr.mxu0 0.0
        %890 = vmatpush2.msra.mxu0 0.0
        %891 = vmatprep.subr.mxu0 0.0
        %892 = vmatpush2.msra.mxu0 0.0
        %893 = vmatprep.subr.mxu0 0.0
        %894 = vmatpush2.msra.mxu0 0.0
        %895 = vmatprep.subr.mxu0 0.0
        %896 = vmatpush2.msra.mxu0 0.0
        %897 = vmatprep.subr.mxu0 0.0
        %898 = vmatpush2.msra.mxu0 0.0
        %899 = vmatprep.subr.mxu0 0.0
        %900 = vmatpush2.msra.mxu0 0.0
        %901 = vmatprep.subr.mxu0 0.0
        %902 = vmatpush2.msra.mxu0 0.0
        %903 = vmatprep.subr.mxu0 0.0
        %904 = vmatpush2.msra.mxu0 0.0
        %905 = vmatprep.mubr.f32.mxu0 0.0
        %v906 = vand.u32 %v186, 4294901760
        %907 = vmatmul.mubr.f32.gmra.mxu0 %v906
        %v908 = vpop.f32.mrf.mxu0
        %v909 = vadd.f32 %v808, %v908
        %v910 = vpop.f32.mrf.mxu0
        %911 = vmatprep.mubr.f32.mxu0 0.0
        %v912 = vand.u32 %v189, 4294901760
        %913 = vmatmul.mubr.f32.gmra.mxu0 %v912
        %v914 = vpop.f32.mrf.mxu0
        %v915 = vadd.f32 %v818, %v914
        %v916 = vpop.f32.mrf.mxu0
        %917 = vdwg.mxu0
        %918 = vmatprep.subr.mxu0 0.0
        %919 = vmatpush1.msra.mxu0 0.0
        %920 = vmatprep.subr.mxu0 0.0
        %921 = vmatpush1.msra.mxu0 0.0
        %922 = vmatprep.subr.mxu0 0.0
        %923 = vmatpush1.msra.mxu0 0.0
        %924 = vmatprep.subr.mxu0 0.0
        %925 = vmatpush1.msra.mxu0 0.0
        %926 = vmatprep.subr.mxu0 0.0
        %927 = vmatpush1.msra.mxu0 0.0
        %928 = vmatprep.subr.mxu0 0.0
        %929 = vmatpush1.msra.mxu0 0.0
        %930 = vmatprep.subr.mxu0 0.0
        %931 = vmatpush1.msra.mxu0 0.0
        %932 = vmatprep.subr.mxu0 0.0
        %933 = vmatpush1.msra.mxu0 0.0
        %934 = vmatprep.subr.mxu0 0.0
        %935 = vmatpush1.msra.mxu0 0.0
        %936 = vmatprep.subr.mxu0 0.0
        %937 = vmatpush1.msra.mxu0 0.0
        %938 = vmatprep.subr.mxu0 0.0
        %939 = vmatpush1.msra.mxu0 0.0
        %940 = vmatprep.subr.mxu0 0.0
        %941 = vmatpush1.msra.mxu0 0.0
        %942 = vmatprep.subr.mxu0 0.0
        %v943 = vand.u32 %v731, 4294901760
        %v944 = vsub.f32 %v731, %v943
        %945 = vmatpush1.msra.mxu0 %v944
        %946 = vmatprep.subr.mxu0 0.0
        %v947 = vand.u32 %v730, 4294901760
        %v948 = vsub.f32 %v730, %v947
        %949 = vmatpush1.msra.mxu0 %v948
        %950 = vmatprep.subr.mxu0 0.0
        %v951 = vand.u32 %v729, 4294901760
        %v952 = vsub.f32 %v729, %v951
        %953 = vmatpush1.msra.mxu0 %v952
        %954 = vmatprep.subr.mxu0 0.0
        %v955 = vand.u32 %v728, 4294901760
        %v956 = vsub.f32 %v728, %v955
        %957 = vmatpush1.msra.mxu0 %v956
        %958 = vmatprep.subr.mxu0 0.0
        %959 = vmatpush2.msra.mxu0 0.0
        %960 = vmatprep.subr.mxu0 0.0
        %961 = vmatpush2.msra.mxu0 0.0
        %962 = vmatprep.subr.mxu0 0.0
        %963 = vmatpush2.msra.mxu0 0.0
        %964 = vmatprep.subr.mxu0 0.0
        %965 = vmatpush2.msra.mxu0 0.0
        %966 = vmatprep.subr.mxu0 0.0
        %967 = vmatpush2.msra.mxu0 0.0
        %968 = vmatprep.subr.mxu0 0.0
        %969 = vmatpush2.msra.mxu0 0.0
        %970 = vmatprep.subr.mxu0 0.0
        %971 = vmatpush2.msra.mxu0 0.0
        %972 = vmatprep.subr.mxu0 0.0
        %973 = vmatpush2.msra.mxu0 0.0
        %974 = vmatprep.subr.mxu0 0.0
        %975 = vmatpush2.msra.mxu0 0.0
        %976 = vmatprep.subr.mxu0 0.0
        %977 = vmatpush2.msra.mxu0 0.0
        %978 = vmatprep.subr.mxu0 0.0
        %979 = vmatpush2.msra.mxu0 0.0
        %980 = vmatprep.subr.mxu0 0.0
        %981 = vmatpush2.msra.mxu0 0.0
        %982 = vmatprep.subr.mxu0 0.0
        %983 = vmatpush2.msra.mxu0 0.0
        %984 = vmatprep.subr.mxu0 0.0
        %985 = vmatpush2.msra.mxu0 0.0
        %986 = vmatprep.subr.mxu0 0.0
        %987 = vmatpush2.msra.mxu0 0.0
        %988 = vmatprep.subr.mxu0 0.0
        %989 = vmatpush2.msra.mxu0 0.0
        %990 = vmatprep.mubr.f32.mxu0 0.0
        %v991 = vand.u32 %v186, 4294901760
        %v992 = vsub.f32 %v186, %v991
        %993 = vmatmul.mubr.f32.gmra.mxu0 %v992
        %v994 = vpop.f32.mrf.mxu0
        %v995 = vadd.f32 %v909, %v994
        %v996 = vpop.f32.mrf.mxu0
        %997 = vmatprep.mubr.f32.mxu0 0.0
        %v998 = vand.u32 %v189, 4294901760
        %v999 = vsub.f32 %v189, %v998
        %1000 = vmatmul.mubr.f32.gmra.mxu0 %v999
        %v1001 = vpop.f32.mrf.mxu0
        %v1002 = vadd.f32 %v915, %v1001
        %v1003 = vpop.f32.mrf.mxu0
        %1004 = vdwg.mxu0
        %1005 = vmatprep.subr.mxu0 0.0
        %1006 = vmatpush1.msra.mxu0 0.0
        %1007 = vmatprep.subr.mxu0 0.0
        %1008 = vmatpush1.msra.mxu0 0.0
        %1009 = vmatprep.subr.mxu0 0.0
        %1010 = vmatpush1.msra.mxu0 0.0
        %1011 = vmatprep.subr.mxu0 0.0
        %1012 = vmatpush1.msra.mxu0 0.0
        %1013 = vmatprep.subr.mxu0 0.0
        %1014 = vmatpush1.msra.mxu0 0.0
        %1015 = vmatprep.subr.mxu0 0.0
        %1016 = vmatpush1.msra.mxu0 0.0
        %1017 = vmatprep.subr.mxu0 0.0
        %1018 = vmatpush1.msra.mxu0 0.0
        %1019 = vmatprep.subr.mxu0 0.0
        %1020 = vmatpush1.msra.mxu0 0.0
        %1021 = vmatprep.subr.mxu0 0.0
        %1022 = vmatpush1.msra.mxu0 0.0
        %1023 = vmatprep.subr.mxu0 0.0
        %1024 = vmatpush1.msra.mxu0 0.0
        %1025 = vmatprep.subr.mxu0 0.0
        %1026 = vmatpush1.msra.mxu0 0.0
        %1027 = vmatprep.subr.mxu0 0.0
        %1028 = vmatpush1.msra.mxu0 0.0
        %1029 = vmatprep.subr.mxu0 0.0
        %v1030 = vand.u32 %v731, 4294901760
        %1031 = vmatpush1.msra.mxu0 %v1030
        %1032 = vmatprep.subr.mxu0 0.0
        %v1033 = vand.u32 %v730, 4294901760
        %1034 = vmatpush1.msra.mxu0 %v1033
        %1035 = vmatprep.subr.mxu0 0.0
        %v1036 = vand.u32 %v729, 4294901760
        %1037 = vmatpush1.msra.mxu0 %v1036
        %1038 = vmatprep.subr.mxu0 0.0
        %v1039 = vand.u32 %v728, 4294901760
        %1040 = vmatpush1.msra.mxu0 %v1039
        %1041 = vmatprep.subr.mxu0 0.0
        %1042 = vmatpush2.msra.mxu0 0.0
        %1043 = vmatprep.subr.mxu0 0.0
        %1044 = vmatpush2.msra.mxu0 0.0
        %1045 = vmatprep.subr.mxu0 0.0
        %1046 = vmatpush2.msra.mxu0 0.0
        %1047 = vmatprep.subr.mxu0 0.0
        %1048 = vmatpush2.msra.mxu0 0.0
        %1049 = vmatprep.subr.mxu0 0.0
        %1050 = vmatpush2.msra.mxu0 0.0
        %1051 = vmatprep.subr.mxu0 0.0
        %1052 = vmatpush2.msra.mxu0 0.0
        %1053 = vmatprep.subr.mxu0 0.0
        %1054 = vmatpush2.msra.mxu0 0.0
        %1055 = vmatprep.subr.mxu0 0.0
        %1056 = vmatpush2.msra.mxu0 0.0
        %1057 = vmatprep.subr.mxu0 0.0
        %1058 = vmatpush2.msra.mxu0 0.0
        %1059 = vmatprep.subr.mxu0 0.0
        %1060 = vmatpush2.msra.mxu0 0.0
        %1061 = vmatprep.subr.mxu0 0.0
        %1062 = vmatpush2.msra.mxu0 0.0
        %1063 = vmatprep.subr.mxu0 0.0
        %1064 = vmatpush2.msra.mxu0 0.0
        %1065 = vmatprep.subr.mxu0 0.0
        %1066 = vmatpush2.msra.mxu0 0.0
        %1067 = vmatprep.subr.mxu0 0.0
        %1068 = vmatpush2.msra.mxu0 0.0
        %1069 = vmatprep.subr.mxu0 0.0
        %1070 = vmatpush2.msra.mxu0 0.0
        %1071 = vmatprep.subr.mxu0 0.0
        %1072 = vmatpush2.msra.mxu0 0.0
        %1073 = vmatprep.mubr.f32.mxu0 0.0
        %v1074 = vand.u32 %v186, 4294901760
        %v1075 = vsub.f32 %v186, %v1074
        %v1076 = vand.u32 %v1075, 4294901760
        %1077 = vmatmul.mubr.f32.gmra.mxu0 %v1076
        %v1078 = vpop.f32.mrf.mxu0
        %v1079 = vadd.f32 %v995, %v1078
        %v1080 = vpop.f32.mrf.mxu0
        %1081 = vmatprep.mubr.f32.mxu0 0.0
        %v1082 = vand.u32 %v189, 4294901760
        %v1083 = vsub.f32 %v189, %v1082
        %v1084 = vand.u32 %v1083, 4294901760
        %1085 = vmatmul.mubr.f32.gmra.mxu0 %v1084
        %v1086 = vpop.f32.mrf.mxu0
        %v1087 = vadd.f32 %v1002, %v1086
        %v1088 = vpop.f32.mrf.mxu0
        %1089 = vdwg.mxu0
        %1090 = vmatprep.subr.mxu0 0.0
        %1091 = vmatpush1.msra.mxu0 0.0
        %1092 = vmatprep.subr.mxu0 0.0
        %1093 = vmatpush1.msra.mxu0 0.0
        %1094 = vmatprep.subr.mxu0 0.0
        %1095 = vmatpush1.msra.mxu0 0.0
        %1096 = vmatprep.subr.mxu0 0.0
        %1097 = vmatpush1.msra.mxu0 0.0
        %1098 = vmatprep.subr.mxu0 0.0
        %1099 = vmatpush1.msra.mxu0 0.0
        %1100 = vmatprep.subr.mxu0 0.0
        %1101 = vmatpush1.msra.mxu0 0.0
        %1102 = vmatprep.subr.mxu0 0.0
        %1103 = vmatpush1.msra.mxu0 0.0
        %1104 = vmatprep.subr.mxu0 0.0
        %1105 = vmatpush1.msra.mxu0 0.0
        %1106 = vmatprep.subr.mxu0 0.0
        %1107 = vmatpush1.msra.mxu0 0.0
        %1108 = vmatprep.subr.mxu0 0.0
        %1109 = vmatpush1.msra.mxu0 0.0
        %1110 = vmatprep.subr.mxu0 0.0
        %1111 = vmatpush1.msra.mxu0 0.0
        %1112 = vmatprep.subr.mxu0 0.0
        %1113 = vmatpush1.msra.mxu0 0.0
        %1114 = vmatprep.subr.mxu0 0.0
        %v1115 = vand.u32 %v731, 4294901760
        %v1116 = vsub.f32 %v731, %v1115
        %v1117 = vand.u32 %v1116, 4294901760
        %1118 = vmatpush1.msra.mxu0 %v1117
        %1119 = vmatprep.subr.mxu0 0.0
        %v1120 = vand.u32 %v730, 4294901760
        %v1121 = vsub.f32 %v730, %v1120
        %v1122 = vand.u32 %v1121, 4294901760
        %1123 = vmatpush1.msra.mxu0 %v1122
        %1124 = vmatprep.subr.mxu0 0.0
        %v1125 = vand.u32 %v729, 4294901760
        %v1126 = vsub.f32 %v729, %v1125
        %v1127 = vand.u32 %v1126, 4294901760
        %1128 = vmatpush1.msra.mxu0 %v1127
        %1129 = vmatprep.subr.mxu0 0.0
        %v1130 = vand.u32 %v728, 4294901760
        %v1131 = vsub.f32 %v728, %v1130
        %v1132 = vand.u32 %v1131, 4294901760
        %1133 = vmatpush1.msra.mxu0 %v1132
        %1134 = vmatprep.subr.mxu0 0.0
        %1135 = vmatpush2.msra.mxu0 0.0
        %1136 = vmatprep.subr.mxu0 0.0
        %1137 = vmatpush2.msra.mxu0 0.0
        %1138 = vmatprep.subr.mxu0 0.0
        %1139 = vmatpush2.msra.mxu0 0.0
        %1140 = vmatprep.subr.mxu0 0.0
        %1141 = vmatpush2.msra.mxu0 0.0
        %1142 = vmatprep.subr.mxu0 0.0
        %1143 = vmatpush2.msra.mxu0 0.0
        %1144 = vmatprep.subr.mxu0 0.0
        %1145 = vmatpush2.msra.mxu0 0.0
        %1146 = vmatprep.subr.mxu0 0.0
        %1147 = vmatpush2.msra.mxu0 0.0
        %1148 = vmatprep.subr.mxu0 0.0
        %1149 = vmatpush2.msra.mxu0 0.0
        %1150 = vmatprep.subr.mxu0 0.0
        %1151 = vmatpush2.msra.mxu0 0.0
        %1152 = vmatprep.subr.mxu0 0.0
        %1153 = vmatpush2.msra.mxu0 0.0
        %1154 = vmatprep.subr.mxu0 0.0
        %1155 = vmatpush2.msra.mxu0 0.0
        %1156 = vmatprep.subr.mxu0 0.0
        %1157 = vmatpush2.msra.mxu0 0.0
        %1158 = vmatprep.subr.mxu0 0.0
        %1159 = vmatpush2.msra.mxu0 0.0
        %1160 = vmatprep.subr.mxu0 0.0
        %1161 = vmatpush2.msra.mxu0 0.0
        %1162 = vmatprep.subr.mxu0 0.0
        %1163 = vmatpush2.msra.mxu0 0.0
        %1164 = vmatprep.subr.mxu0 0.0
        %1165 = vmatpush2.msra.mxu0 0.0
        %1166 = vmatprep.mubr.f32.mxu0 0.0
        %v1167 = vand.u32 %v186, 4294901760
        %1168 = vmatmul.mubr.f32.gmra.mxu0 %v1167
        %v1169 = vpop.f32.mrf.mxu0
        %v1170 = vadd.f32 %v1079, %v1169
        %v1171 = vpop.f32.mrf.mxu0
        %1172 = vmatprep.mubr.f32.mxu0 0.0
        %v1173 = vand.u32 %v189, 4294901760
        %1174 = vmatmul.mubr.f32.gmra.mxu0 %v1173
        %v1175 = vpop.f32.mrf.mxu0
        %v1176 = vadd.f32 %v1087, %v1175
        %v1177 = vpop.f32.mrf.mxu0
        %1178 = vdwg.mxu0
        %1179 = vmatprep.subr.mxu0 0.0
        %1180 = vmatpush1.msra.mxu0 0.0
        %1181 = vmatprep.subr.mxu0 0.0
        %1182 = vmatpush1.msra.mxu0 0.0
        %1183 = vmatprep.subr.mxu0 0.0
        %1184 = vmatpush1.msra.mxu0 0.0
        %1185 = vmatprep.subr.mxu0 0.0
        %1186 = vmatpush1.msra.mxu0 0.0
        %1187 = vmatprep.subr.mxu0 0.0
        %1188 = vmatpush1.msra.mxu0 0.0
        %1189 = vmatprep.subr.mxu0 0.0
        %1190 = vmatpush1.msra.mxu0 0.0
        %1191 = vmatprep.subr.mxu0 0.0
        %1192 = vmatpush1.msra.mxu0 0.0
        %1193 = vmatprep.subr.mxu0 0.0
        %1194 = vmatpush1.msra.mxu0 0.0
        %1195 = vmatprep.subr.mxu0 0.0
        %1196 = vmatpush1.msra.mxu0 0.0
        %1197 = vmatprep.subr.mxu0 0.0
        %1198 = vmatpush1.msra.mxu0 0.0
        %1199 = vmatprep.subr.mxu0 0.0
        %1200 = vmatpush1.msra.mxu0 0.0
        %1201 = vmatprep.subr.mxu0 0.0
        %1202 = vmatpush1.msra.mxu0 0.0
        %1203 = vmatprep.subr.mxu0 0.0
        %v1204 = vand.u32 %v731, 4294901760
        %1205 = vmatpush1.msra.mxu0 %v1204
        %1206 = vmatprep.subr.mxu0 0.0
        %v1207 = vand.u32 %v730, 4294901760
        %1208 = vmatpush1.msra.mxu0 %v1207
        %1209 = vmatprep.subr.mxu0 0.0
        %v1210 = vand.u32 %v729, 4294901760
        %1211 = vmatpush1.msra.mxu0 %v1210
        %1212 = vmatprep.subr.mxu0 0.0
        %v1213 = vand.u32 %v728, 4294901760
        %1214 = vmatpush1.msra.mxu0 %v1213
        %1215 = vmatprep.subr.mxu0 0.0
        %1216 = vmatpush2.msra.mxu0 0.0
        %1217 = vmatprep.subr.mxu0 0.0
        %1218 = vmatpush2.msra.mxu0 0.0
        %1219 = vmatprep.subr.mxu0 0.0
        %1220 = vmatpush2.msra.mxu0 0.0
        %1221 = vmatprep.subr.mxu0 0.0
        %1222 = vmatpush2.msra.mxu0 0.0
        %1223 = vmatprep.subr.mxu0 0.0
        %1224 = vmatpush2.msra.mxu0 0.0
        %1225 = vmatprep.subr.mxu0 0.0
        %1226 = vmatpush2.msra.mxu0 0.0
        %1227 = vmatprep.subr.mxu0 0.0
        %1228 = vmatpush2.msra.mxu0 0.0
        %1229 = vmatprep.subr.mxu0 0.0
        %1230 = vmatpush2.msra.mxu0 0.0
        %1231 = vmatprep.subr.mxu0 0.0
        %1232 = vmatpush2.msra.mxu0 0.0
        %1233 = vmatprep.subr.mxu0 0.0
        %1234 = vmatpush2.msra.mxu0 0.0
        %1235 = vmatprep.subr.mxu0 0.0
        %1236 = vmatpush2.msra.mxu0 0.0
        %1237 = vmatprep.subr.mxu0 0.0
        %1238 = vmatpush2.msra.mxu0 0.0
        %1239 = vmatprep.subr.mxu0 0.0
        %1240 = vmatpush2.msra.mxu0 0.0
        %1241 = vmatprep.subr.mxu0 0.0
        %1242 = vmatpush2.msra.mxu0 0.0
        %1243 = vmatprep.subr.mxu0 0.0
        %1244 = vmatpush2.msra.mxu0 0.0
        %1245 = vmatprep.subr.mxu0 0.0
        %1246 = vmatpush2.msra.mxu0 0.0
        %1247 = vmatprep.mubr.f32.mxu0 0.0
        %v1248 = vand.u32 %v186, 4294901760
        %1249 = vmatmul.mubr.f32.gmra.mxu0 %v1248
        %v1250 = vpop.f32.mrf.mxu0
        %v1251 = vadd.f32 %v1170, %v1250
        %v1252 = vpop.f32.mrf.mxu0
        %1253 = vmatprep.mubr.f32.mxu0 0.0
        %v1254 = vand.u32 %v189, 4294901760
        %1255 = vmatmul.mubr.f32.gmra.mxu0 %v1254
        %v1256 = vpop.f32.mrf.mxu0
        %v1257 = vadd.f32 %v1176, %v1256
        %v1258 = vpop.f32.mrf.mxu0
        %1259 = vdwg.mxu0
        %v1260 = vmax.f32 %v710, %v1251
        %v1261 = vmax.f32 %v716, %v1257
        %vm1262 = vcmask 130048
        %1263 = vst.msk [vmem:[%s152] sm:$0xff] %vm1262, %v1260
        %1264 = vst.msk [vmem:[%s152 + $0x8] sm:$0xff] %vm1262, %v1261
        %s1265 = sand.u32 %s68, 1
        %s1266 = scalar_lea.sflag [#allocation4], %s1265
        %s1267 = sand.u32 %s68, 1
        %s1268 = smul.addr %s1267, 16
        %s1269 = scalar_lea.vmem [#allocation5], %s1268
        // Predicated region
        $region29: #{tpu_custom_call.1} parent=23 // pred_check
          %p1270 = pneg %p78
        $region30: #{tpu_custom_call.1} parent=23 // pred_check_branch
          %1272 = sbr.rel (%p1270) target = $region32
        $region31: #{tpu_custom_call.1} parent=23 // pred_region
          %s1273 = smul.u32 2, %s23
          %s1275 = ssub.s32 256, 256
          %1276 = vsyncadd %s1266, %s1275
          %s1277 = smul.addr %s22, 2
          %s1278 = sadd.s32 %s1273, %s1277
          %s1279 = smul.addr %s1278, 128
          %s1280 = scalar_lea.hbm %s1, %s1279
          %s1281 = sshll.u32 %s1269, 4
          %s1282 = int_to_ptr.vmem [resolvable:$true] %s1281
          %1287 = dma.vmem_to_hbm [thread:$0]  %s1282, 256, %s1280, %s1266, 128, 128, 8
        $region32: #{tpu_custom_call.1} parent=23 // pred_fallthru
          _
      $region24: #{tpu_custom_call.1} parent=5 // pred_fallthru
        _
      %p1288 = scmp.le.s32.totalorder 2, %s13
      // Predicated region
      $region33: #{tpu_custom_call.1} parent=5 // pred_check
        %p1289 = pneg %p1288
      $region34: #{tpu_custom_call.1} parent=5 // pred_check_branch
        %1291 = sbr.rel (%p1289) target = $region36
      $region35: #{tpu_custom_call.1} parent=5 // pred_region
        %s1292 = ssub.s32 %s13, 2
        // Predicated region
        $region37: #{tpu_custom_call.1} parent=35 // pred_check
          %p1293 = pneg %p84
        $region38: #{tpu_custom_call.1} parent=35 // pred_check_branch
          %1295 = sbr.rel (%p1293) target = $region40
        $region39: #{tpu_custom_call.1} parent=35 // pred_region
          %s1296 = sand.u32 %s69, 1
          %s1297 = scalar_lea.sflag [#allocation4], %s1296
          %s1298 = sand.u32 %s69, 1
          %s1299 = smul.addr %s1298, 16
          %s1300 = scalar_lea.vmem [#allocation5], %s1299
          %1301 = dma.done %s1297, 256
        $region40: #{tpu_custom_call.1} parent=35 // pred_fallthru
          _
      $region36: #{tpu_custom_call.1} parent=5 // pred_fallthru
        _
    $region6: #{tpu_custom_call.1} parent=1 // loop_footer
      %s17 = sadd.s32 1, %s13
    $region7: #{tpu_custom_call.1} parent=1 // loop_footer_branch
      %12 = sbr.rel target = $region3
    $region8: #{tpu_custom_call.1} parent=1 // loop_exit
      _
    %1302 = vsyncpa [#allocation3], 1
    %s1303 = scalar_lea.sflag [#allocation3], 1
    %1304 = vsyncpa %s1303, 1
    %1305 = vsyncpa [#allocation4], 1
    %s1306 = scalar_lea.sflag [#allocation4], 1
    %1307 = vsyncpa %s1306, 1

</llo_original>
